<compile_context>
chip_gen: v7x
topology: tpu7x:2x2x1
jax: 0.10.0
libtpu: 0.0.40
codegen_flags: <defaults>
</compile_context>

<pallas_src>
import functools

import jax
import jax.numpy as jnp
import numpy as np
from jax.experimental import pallas as pl
from jax.experimental.pallas import tpu as pltpu

N_DIM = 32      # n_dimension (divisible by 8 for the /2,/4,/8 MLP)
N_NODES = 16    # number of graph nodes
N_EDGES = 32    # number of graph edges
OUT_DIM = 3     # embedded coordinate dimension
LANES = 128     # TPU lane width; output slab / param slab lane count


def _ceil8(v):
    return -(-v // 8) * 8


def make_layout(n_dim, n_nodes, lanes=LANES):
    """Row layout of the packed parameter slab.

    Weight matrices start at 8-aligned sublane offsets (MXU RHS operands);
    the four 1-row biases are packed as consecutive single rows right after
    the last weight (no per-bias 8-row padding -> ~30% fewer slab bytes).
    """
    assert n_dim % 8 == 0
    x_cols = lanes - n_nodes                       # padded width of final layer
    assert x_cols >= 8 and OUT_DIM <= 8
    dims = [n_dim, n_dim // 2, n_dim // 4, n_dim // 8, OUT_DIM]
    layout, row = {}, 0
    for i, name in enumerate(("w1", "w2", "w3", "w4")):
        r = dims[i]
        c = dims[i + 1] if i < 3 else x_cols
        row = _ceil8(row)
        layout[name] = (row, r, c)
        row += r
    for i, name in enumerate(("b1", "b2", "b3", "b4")):
        c = dims[i + 1] if i < 3 else x_cols
        layout[name] = (row, 1, c)
        row += 1
    return layout, _ceil8(row), x_cols


def pack_params(params, layout, total_rows, x_cols, lanes=LANES):
    """Pack weights/biases into one [total_rows, 128] bf16 slab (done ONCE).

    Built on the host with numpy (single device transfer, no per-tensor
    dispatches). The final layer is zero-padded to (lanes - n_nodes) output
    columns so the coord block comes out of the kernel already padded with
    exact zeros.
    """
    (w1, b1), (w2, b2), (w3, b3), (w4, b4) = params
    out_dim = w4.shape[1]
    pad = x_cols - out_dim
    tensors = {
        "w1": np.asarray(w1), "w2": np.asarray(w2), "w3": np.asarray(w3),
        "w4": np.pad(np.asarray(w4), ((0, 0), (0, pad))),
        "b1": np.asarray(b1).reshape(1, -1), "b2": np.asarray(b2).reshape(1, -1),
        "b3": np.asarray(b3).reshape(1, -1),
        "b4": np.pad(np.asarray(b4).reshape(1, -1), ((0, 0), (0, pad))),
    }
    slab = np.zeros((total_rows, lanes), np.float32)
    for name, t in tensors.items():
        r0, r, c = layout[name]
        slab[r0:r0 + r, 0:c] = t.astype(np.float32)
    return jnp.asarray(slab, dtype=jnp.bfloat16)


def _make_kernel(n_nodes, gpb, out_dim, layout, lanes):
    """gpb graphs per grid step, stacked into the MXU M dimension."""

    def kernel(nodes_ref, p_ref, out_ref):
        def sub(name):                       # static slice of the param slab
            r0, r, c = layout[name]
            return p_ref[r0:r0 + r, 0:c]     # bf16

        def bias(name):                      # bias add / ReLU kept in f32
            return sub(name).astype(jnp.float32)

        # x_embedding: ReLU -> Linear(D,D/2) -> ... -> Linear(D/8, 3), run for
        # all gpb*n node rows in one matmul chain (fills MXU M when gpb*n=128).
        h = jnp.maximum(nodes_ref[...], 0.0)
        h = jnp.maximum(jnp.dot(h.astype(jnp.bfloat16), sub("w1"),
                                preferred_element_type=jnp.float32) + bias("b1"), 0.0)
        h = jnp.maximum(jnp.dot(h.astype(jnp.bfloat16), sub("w2"),
                                preferred_element_type=jnp.float32) + bias("b2"), 0.0)
        h = jnp.maximum(jnp.dot(h.astype(jnp.bfloat16), sub("w3"),
                                preferred_element_type=jnp.float32) + bias("b3"), 0.0)
        # Final layer zero-padded to (lanes - n_nodes) cols: columns >= out_dim
        # of x are exact zeros, so x is already the padded coord block.
        x = jnp.dot(h.astype(jnp.bfloat16), sub("w4"),
                    preferred_element_type=jnp.float32) + bias("b4")

        # torch.cdist(x, x, p=2) per graph, via the direct pairwise form
        # (exact, no Gram-identity cancellation, guarded zero diagonal).
        dists = []
        for g in range(gpb):                             # static, gpb <= 8
            xg = x[g * n_nodes:(g + 1) * n_nodes, :]
            xgt = xg[:, 0:8].T                           # [8, n] small XLU transpose
            d2 = (xg[:, 0:1] - xgt[0:1, :]) ** 2
            for k in range(1, out_dim):                  # unrolled, out_dim=3
                d2 = d2 + (xg[:, k:k + 1] - xgt[k:k + 1, :]) ** 2
            dists.append(jnp.where(d2 > 0.0, jnp.sqrt(d2), 0.0))
        dist = jnp.concatenate(dists, axis=0) if gpb > 1 else dists[0]

        # ONE full-width, lane-dense, unmasked store: coords (already at lane
        # offset 0) first, the narrow per-graph dist block in the tail lanes.
        out_ref[...] = jnp.concatenate([x, dist], axis=1)

    return kernel


@functools.lru_cache(maxsize=None)
def _build_forward(n_nodes, n_dim, batch, lanes=LANES):
    """Memoized builder: pallas_call + jit constructed once per shape."""
    layout, total_rows, x_cols = make_layout(n_dim, n_nodes, lanes)

    # Stack up to lanes//n_nodes graphs into one grid step so the matmul LHS
    # fills the MXU M dimension (8 * 16 = 128 rows).
    gpb = max(1, min(batch, lanes // n_nodes))
    while batch % gpb:
        gpb -= 1
    num_blocks = batch // gpb
    m = gpb * n_nodes

    kernel = _make_kernel(n_nodes, gpb, OUT_DIM, layout, lanes)

    dims = [n_dim, n_dim // 2, n_dim // 4, n_dim // 8]
    flops = 2 * batch * n_nodes * (dims[0] * dims[1] + dims[1] * dims[2]
                                   + dims[2] * dims[3] + dims[3] * x_cols)
    bytes_accessed = (batch * n_nodes * n_dim * 4          # nodes (f32)
                      + total_rows * lanes * 2             # param slab (bf16)
                      + batch * n_nodes * lanes * 4)       # packed output (f32)

    call = pl.pallas_call(
        kernel,
        grid=(num_blocks,),
        in_specs=[
            pl.BlockSpec((m, n_dim), lambda i: (i, 0)),          # node rows (VMEM)
            pl.BlockSpec((total_rows, lanes), lambda i: (0, 0)),  # slab, fetched once
        ],
        out_specs=pl.BlockSpec((m, lanes), lambda i: (i, 0)),
        out_shape=jax.ShapeDtypeStruct((batch * n_nodes, lanes), jnp.float32),
        # Batch grid axis sharded across both TensorCores on v7x (no-op on
        # v5e/v6e). Resident VMEM is ~tens of KiB, far below the 32 MiB scoped
        # limit on any generation, so no re-tiling is needed.
        compiler_params=pltpu.CompilerParams(
            dimension_semantics=("parallel",)),
        cost_estimate=pl.CostEstimate(
            flops=flops,
            transcendentals=batch * n_nodes * n_nodes,            # sqrt per pair
            bytes_accessed=bytes_accessed),
    )

    @jax.jit
    def forward(nodes_flat, param_slab):
        packed = call(nodes_flat, param_slab)
        x = packed[:, 0:OUT_DIM].reshape(batch, n_nodes, OUT_DIM)
        dist = packed[:, x_cols:x_cols + n_nodes].reshape(batch, n_nodes, n_nodes)
        return x, dist

    return forward


class OurDynamicsPallas:
    """Pallas port of OurDynamics.forward (x_embedding + pairwise cdist)."""

    def __init__(self, params, n_dim, n_nodes, lanes=LANES):
        self.n_dim, self.n_nodes, self.lanes = n_dim, n_nodes, lanes
        layout, total_rows, x_cols = make_layout(n_dim, n_nodes, lanes)
        # Parameters packed once, out of the per-call path.
        self.param_slab = jax.device_put(
            pack_params(params, layout, total_rows, x_cols, lanes))

    def __call__(self, nodes, edges, edge_attr=None):
        # edges / edge_attr only feed the untranslatable SE3Transformer / dgl
        # stage (see module-level TODOs).
        del edges, edge_attr
        batched = nodes.ndim == 3
        bn = nodes if batched else nodes[None]
        b = bn.shape[0]
        forward = _build_forward(self.n_nodes, self.n_dim, b, self.lanes)
        x, dist = forward(bn.reshape(b * self.n_nodes, self.n_dim).astype(jnp.float32),
                          self.param_slab)
        if not batched:
            x, dist = x[0], dist[0]
        # (out, out, distance) with the SE(3) output stood in by x (see TODO).
        return x, x, dist


def init_params(key, n_dim):
    # PyTorch nn.Linear-style init: U(-1/sqrt(fan_in), +1/sqrt(fan_in)).
    dims = [n_dim, n_dim // 2, n_dim // 4, n_dim // 8, OUT_DIM]
    params = []
    for i in range(4):
        key, kw, kb = jax.random.split(key, 3)
        bound = 1.0 / float(dims[i]) ** 0.5
        w = jax.random.uniform(kw, (dims[i], dims[i + 1]), jnp.float32, -bound, bound)
        b = jax.random.uniform(kb, (1, dims[i + 1]), jnp.float32, -bound, bound)
        params.append((w, b))
    return params


def reference(nodes, params):
    """Pure-JAX f32 reference for the x_embedding + cdist portion."""
    h = jnp.maximum(nodes, 0.0)
    for i, (w, b) in enumerate(params):
        h = h @ w + b
        if i < len(params) - 1:
            h = jnp.maximum(h, 0.0)
    x = h
    diff = x[:, None, :] - x[None, :, :]
    dist = jnp.sqrt(jnp.sum(diff * diff, axis=-1))
    return x, dist


if __name__ == "__main__":
    key = jax.random.PRNGKey(0)
    kn, ks, kd, kp, kb = jax.random.split(key, 5)

    nodes = jax.random.normal(kn, (N_NODES, N_DIM), dtype=jnp.float32)
    indices_src = jax.random.randint(ks, (N_EDGES,), 0, N_NODES)
    indices_dst = jax.random.randint(kd, (N_EDGES,), 0, N_NODES)
    edge_attr = jnp.ones((N_EDGES, 1), jnp.float32)
    params = init_params(kp, N_DIM)

    model = OurDynamicsPallas(params, N_DIM, N_NODES)

    # --- Single-graph call (mirrors OurDynamics.forward) --------------------
    out, out2, distance = model(nodes, (indices_src, indices_dst), edge_attr)
    jax.block_until_ready((out, out2, distance))
    assert out.shape == (N_NODES, OUT_DIM)
    assert out2.shape == (N_NODES, OUT_DIM)
    assert distance.shape == (N_NODES, N_NODES)

    # Loose tolerance: bf16 MXU weights vs. f32 reference.
    x_ref, d_ref = reference(nodes, params)
    assert bool(jnp.allclose(out, x_ref, atol=5e-2, rtol=5e-2))
    assert bool(jnp.allclose(distance, d_ref, atol=5e-2, rtol=5e-2))

    # Second call reuses the memoized kernel / jit (no rebuild or retrace).
    out_b, _, dist_b = model(nodes, (indices_src, indices_dst), edge_attr)
    jax.block_until_ready((out_b, dist_b))

    # --- Batched call: 8 timesteps stacked into the MXU M dimension ---------
    BATCH = 8
    bnodes = jax.random.normal(kb, (BATCH, N_NODES, N_DIM), dtype=jnp.float32)
    bx, _, bdist = model(bnodes, (indices_src, indices_dst), edge_attr)
    jax.block_until_ready((bx, bdist))
    assert bx.shape == (BATCH, N_NODES, OUT_DIM)
    assert bdist.shape == (BATCH, N_NODES, N_NODES)
    for g in (0, BATCH - 1):
        xr, dr = reference(bnodes[g], params)
        assert bool(jnp.allclose(bx[g], xr, atol=5e-2, rtol=5e-2))
        assert bool(jnp.allclose(bdist[g], dr, atol=5e-2, rtol=5e-2))

    print("KERNEL_OK")
</pallas_src>

<mosaic_0001>
module attributes {stable_mosaic.version = 11 : i64} {
  func.func @kernel(%arg0: i32, %arg1: memref<16x32xf32, #tpu.memory_space<vmem>>, %arg2: memref<64x128xbf16, #tpu.memory_space<vmem>>, %arg3: memref<16x128xf32, #tpu.memory_space<vmem>>) attributes {dimension_semantics = [#tpu.dimension_semantics<parallel>], iteration_bounds = array<i64: 1>, scalar_prefetch = 0 : i64, scratch_operands = 0 : i64, tpu.core_type = #tpu.core_type<tc>, window_params = [{transform_indices = @transform_0, window_bounds = array<i64: 16, 32>}, {pipeline_mode = #tpu.pipeline_mode<synchronous>, transform_indices = @transform_1, window_bounds = array<i64: 64, 128>}, {transform_indices = @transform_2, window_bounds = array<i64: 16, 128>}]} {
    %c0 = arith.constant 0 : index
    %c0_0 = arith.constant 0 : index
    %0 = vector.load %arg1[%c0, %c0_0] : memref<16x32xf32, #tpu.memory_space<vmem>>, vector<16x32xf32>
    %cst = arith.constant 0.000000e+00 : f32
    %1 = vector.broadcast %cst : f32 to vector<16x32xf32>
    %2 = arith.maximumf %0, %1 : vector<16x32xf32>
    %3 = arith.truncf %2 : vector<16x32xf32> to vector<16x32xbf16>
    %c0_1 = arith.constant 0 : index
    %c0_2 = arith.constant 0 : index
    %4 = vector.load %arg2[%c0_1, %c0_2] : memref<64x128xbf16, #tpu.memory_space<vmem>>, vector<32x16xbf16>
    %cst_3 = arith.constant dense<0.000000e+00> : vector<16x16xf32>
    %5 = tpu.matmul %3, %4, %cst_3 {dimension_numbers = #tpu.dot_dimension_numbers<[1], [0], [0], [1], [0, 0, 1, 1], [], []>} : vector<16x32xbf16>, vector<32x16xbf16>, vector<16x16xf32> -> vector<16x16xf32>
    %c60 = arith.constant 60 : index
    %c0_4 = arith.constant 0 : index
    %6 = vector.load %arg2[%c60, %c0_4] : memref<64x128xbf16, #tpu.memory_space<vmem>>, vector<1x16xbf16>
    %7 = arith.extf %6 : vector<1x16xbf16> to vector<1x16xf32>
    %8 = vector.broadcast %7 : vector<1x16xf32> to vector<16x16xf32>
    %9 = arith.addf %5, %8 : vector<16x16xf32>
    %cst_5 = arith.constant 0.000000e+00 : f32
    %10 = vector.broadcast %cst_5 : f32 to vector<16x16xf32>
    %11 = arith.maximumf %9, %10 : vector<16x16xf32>
    %12 = arith.truncf %11 : vector<16x16xf32> to vector<16x16xbf16>
    %c32 = arith.constant 32 : index
    %c0_6 = arith.constant 0 : index
    %13 = vector.load %arg2[%c32, %c0_6] : memref<64x128xbf16, #tpu.memory_space<vmem>>, vector<16x8xbf16>
    %cst_7 = arith.constant dense<0.000000e+00> : vector<16x8xf32>
    %14 = tpu.matmul %12, %13, %cst_7 {dimension_numbers = #tpu.dot_dimension_numbers<[1], [0], [0], [1], [0, 0, 1, 1], [], []>} : vector<16x16xbf16>, vector<16x8xbf16>, vector<16x8xf32> -> vector<16x8xf32>
    %c61 = arith.constant 61 : index
    %c0_8 = arith.constant 0 : index
    %15 = vector.load %arg2[%c61, %c0_8] : memref<64x128xbf16, #tpu.memory_space<vmem>>, vector<1x8xbf16>
    %16 = arith.extf %15 : vector<1x8xbf16> to vector<1x8xf32>
    %17 = vector.broadcast %16 : vector<1x8xf32> to vector<16x8xf32>
    %18 = arith.addf %14, %17 : vector<16x8xf32>
    %cst_9 = arith.constant 0.000000e+00 : f32
    %19 = vector.broadcast %cst_9 : f32 to vector<16x8xf32>
    %20 = arith.maximumf %18, %19 : vector<16x8xf32>
    %21 = arith.truncf %20 : vector<16x8xf32> to vector<16x8xbf16>
    %c48 = arith.constant 48 : index
    %c0_10 = arith.constant 0 : index
    %22 = vector.load %arg2[%c48, %c0_10] : memref<64x128xbf16, #tpu.memory_space<vmem>>, vector<8x4xbf16>
    %cst_11 = arith.constant dense<0.000000e+00> : vector<16x4xf32>
    %23 = tpu.matmul %21, %22, %cst_11 {dimension_numbers = #tpu.dot_dimension_numbers<[1], [0], [0], [1], [0, 0, 1, 1], [], []>} : vector<16x8xbf16>, vector<8x4xbf16>, vector<16x4xf32> -> vector<16x4xf32>
    %c62 = arith.constant 62 : index
    %c0_12 = arith.constant 0 : index
    %24 = vector.load %arg2[%c62, %c0_12] : memref<64x128xbf16, #tpu.memory_space<vmem>>, vector<1x4xbf16>
    %25 = arith.extf %24 : vector<1x4xbf16> to vector<1x4xf32>
    %26 = vector.broadcast %25 : vector<1x4xf32> to vector<16x4xf32>
    %27 = arith.addf %23, %26 : vector<16x4xf32>
    %cst_13 = arith.constant 0.000000e+00 : f32
    %28 = vector.broadcast %cst_13 : f32 to vector<16x4xf32>
    %29 = arith.maximumf %27, %28 : vector<16x4xf32>
    %30 = arith.truncf %29 : vector<16x4xf32> to vector<16x4xbf16>
    %c56 = arith.constant 56 : index
    %c0_14 = arith.constant 0 : index
    %31 = vector.load %arg2[%c56, %c0_14] : memref<64x128xbf16, #tpu.memory_space<vmem>>, vector<4x112xbf16>
    %cst_15 = arith.constant dense<0.000000e+00> : vector<16x112xf32>
    %32 = tpu.matmul %30, %31, %cst_15 {dimension_numbers = #tpu.dot_dimension_numbers<[1], [0], [0], [1], [0, 0, 1, 1], [], []>} : vector<16x4xbf16>, vector<4x112xbf16>, vector<16x112xf32> -> vector<16x112xf32>
    %c63 = arith.constant 63 : index
    %c0_16 = arith.constant 0 : index
    %33 = vector.load %arg2[%c63, %c0_16] : memref<64x128xbf16, #tpu.memory_space<vmem>>, vector<1x112xbf16>
    %34 = arith.extf %33 : vector<1x112xbf16> to vector<1x112xf32>
    %35 = vector.broadcast %34 : vector<1x112xf32> to vector<16x112xf32>
    %36 = arith.addf %32, %35 : vector<16x112xf32>
    %37 = vector.extract_strided_slice %36 {offsets = [0, 0], sizes = [16, 8], strides = [1, 1]} : vector<16x112xf32> to vector<16x8xf32>
    %38 = tpu.transpose %37, [1, 0] : vector<16x8xf32> -> vector<8x16xf32>
    %39 = vector.extract_strided_slice %36 {offsets = [0, 0], sizes = [16, 1], strides = [1, 1]} : vector<16x112xf32> to vector<16x1xf32>
    %40 = vector.extract_strided_slice %38 {offsets = [0, 0], sizes = [1, 16], strides = [1, 1]} : vector<8x16xf32> to vector<1x16xf32>
    %41 = vector.broadcast %39 : vector<16x1xf32> to vector<16x16xf32>
    %42 = vector.broadcast %40 : vector<1x16xf32> to vector<16x16xf32>
    %43 = arith.subf %41, %42 : vector<16x16xf32>
    %44 = arith.mulf %43, %43 : vector<16x16xf32>
    %45 = vector.extract_strided_slice %36 {offsets = [0, 1], sizes = [16, 1], strides = [1, 1]} : vector<16x112xf32> to vector<16x1xf32>
    %46 = vector.extract_strided_slice %38 {offsets = [1, 0], sizes = [1, 16], strides = [1, 1]} : vector<8x16xf32> to vector<1x16xf32>
    %47 = vector.broadcast %45 : vector<16x1xf32> to vector<16x16xf32>
    %48 = vector.broadcast %46 : vector<1x16xf32> to vector<16x16xf32>
    %49 = arith.subf %47, %48 : vector<16x16xf32>
    %50 = arith.mulf %49, %49 : vector<16x16xf32>
    %51 = arith.addf %44, %50 : vector<16x16xf32>
    %52 = vector.extract_strided_slice %36 {offsets = [0, 2], sizes = [16, 1], strides = [1, 1]} : vector<16x112xf32> to vector<16x1xf32>
    %53 = vector.extract_strided_slice %38 {offsets = [2, 0], sizes = [1, 16], strides = [1, 1]} : vector<8x16xf32> to vector<1x16xf32>
    %54 = vector.broadcast %52 : vector<16x1xf32> to vector<16x16xf32>
    %55 = vector.broadcast %53 : vector<1x16xf32> to vector<16x16xf32>
    %56 = arith.subf %54, %55 : vector<16x16xf32>
    %57 = arith.mulf %56, %56 : vector<16x16xf32>
    %58 = arith.addf %51, %57 : vector<16x16xf32>
    %cst_17 = arith.constant 0.000000e+00 : f32
    %59 = vector.broadcast %cst_17 : f32 to vector<16x16xf32>
    %60 = arith.cmpf ogt, %58, %59 : vector<16x16xf32>
    %61 = math.sqrt %58 : vector<16x16xf32>
    %cst_18 = arith.constant 0.000000e+00 : f32
    %62 = vector.broadcast %cst_18 : f32 to vector<16x16xf32>
    %63 = arith.select %60, %61, %62 : vector<16x16xi1>, vector<16x16xf32>
    %64 = tpu.concatenate %36, %63 in 1 : vector<16x112xf32>, vector<16x16xf32> -> vector<16x128xf32>
    %c0_19 = arith.constant 0 : index
    %c0_20 = arith.constant 0 : index
    %65 = vector.load %arg3[%c0_19, %c0_20] : memref<16x128xf32, #tpu.memory_space<vmem>>, vector<16x128xf32>
    tpu.vector_store %arg3[%c0_19, %c0_20], %64 {strides = array<i32>} : memref<16x128xf32, #tpu.memory_space<vmem>>, vector<16x128xf32>,
    return
  }
  func.func @transform_0(%arg0: i32) -> (i32, i32) {
    %c0_i32 = arith.constant 0 : i32
    %c0_i32_0 = arith.constant 0 : i32
    return %arg0, %c0_i32 : i32, i32
  }
  func.func @transform_1(%arg0: i32) -> (i32, i32) {
    %c0_i32 = arith.constant 0 : i32
    %c0_i32_0 = arith.constant 0 : i32
    %c0_i32_1 = arith.constant 0 : i32
    return %c0_i32, %c0_i32_0 : i32, i32
  }
  func.func @transform_2(%arg0: i32) -> (i32, i32) {
    %c0_i32 = arith.constant 0 : i32
    %c0_i32_0 = arith.constant 0 : i32
    return %arg0, %c0_i32 : i32, i32
  }
}

</mosaic_0001>

<llo_original>
// kernel: forward.1
$region0: #{forward.1}
  #allocation0 [shape = 'u32[]', space=smem, size = 0x4, offset = 0x4, fixed_abs, tag = 'smem constant byte address 0x4 - core index']
  #allocation1 [shape = 'u32[144,128]{1,0:T(1,128)}', space=vmem, size = 0x12000, scoped, tag = 'internal scratch']
  %s0 = inlined_call_operand.hbm [shape: f32[16,32], index: 0, kind: input, shape index: {}]
  %s1 = inlined_call_operand.hbm [shape: bf16[64,128], index: 1, kind: input, shape index: {}]
  %s2 = inlined_call_operand.vmem [shape: f32[16,128], index: 2, kind: output, shape index: {}]
  %s3 = sld [smem:[#allocation0]]
  $region26: #{forward.1} parent=0
    _
  %s5 = ssub.s32 1, %s3
  %s6 = scalar_select 0, %s5, %s3
  $region1: #{forward.1} parent=0
    #allocation2 [shape = 'u8[8192]{0}', space=vmem, size = 0x2000, scoped, tag = 'input window, operand 0, single buffered']
    #allocation3 [shape = 's32[1]{0}', space=sflag, size = 0x4, scoped, tag = 'scoped memory for forward.1']
    #allocation4 [shape = 'u8[16384]{0}', space=vmem, size = 0x4000, scoped, tag = 'input window, operand 1, single buffered']
    #allocation5 [shape = 's32[1]{0}', space=sflag, size = 0x4, scoped, tag = 'scoped memory for forward.1']
    %7 = vsyncpa [#allocation3], 0
    %8 = vsyncpa [#allocation5], 0
    // Predicated region
    $region2: #{forward.1} parent=1 // pred_check
      _
    $region3: #{forward.1} parent=1 // pred_check_branch
      %10 = sbr.rel (0) target = $region5
    $region4: #{forward.1} parent=1 // pred_region
      %s12 = ssub.s32 256, 256
      %13 = vsyncadd [#allocation3], %s12
      %s14 = sshll.u32 [#allocation2], 4
      %s15 = int_to_ptr.vmem [resolvable:$true] %s14
      %20 = dma.hbm_to_vmem [thread:$0]  %s0, 256, %s15, [#allocation3], 128, 128, 8
    $region5: #{forward.1} parent=1 // pred_fallthru
      _
    // Predicated region
    $region6: #{forward.1} parent=1 // pred_check
      _
    $region7: #{forward.1} parent=1 // pred_check_branch
      %22 = sbr.rel (0) target = $region9
    $region8: #{forward.1} parent=1 // pred_region
      %s24 = ssub.s32 512, 512
      %25 = vsyncadd [#allocation5], %s24
      %s26 = sshll.u32 [#allocation4], 4
      %s27 = int_to_ptr.vmem [resolvable:$true] %s26
      %32 = dma.hbm_to_vmem [thread:$0]  %s1, 512, %s27, [#allocation5], 64, 64, 4
    $region9: #{forward.1} parent=1 // pred_fallthru
      _
    // Predicated region
    $region10: #{forward.1} parent=1 // pred_check
      _
    $region11: #{forward.1} parent=1 // pred_check_branch
      %34 = sbr.rel (0) target = $region13
    $region12: #{forward.1} parent=1 // pred_region
      %35 = dma.done [#allocation3], 256
    $region13: #{forward.1} parent=1 // pred_fallthru
      _
    // Predicated region
    $region14: #{forward.1} parent=1 // pred_check
      _
    $region15: #{forward.1} parent=1 // pred_check_branch
      %37 = sbr.rel (0) target = $region17
    $region16: #{forward.1} parent=1 // pred_region
      %38 = dma.done [#allocation5], 512
    $region17: #{forward.1} parent=1 // pred_fallthru
      _
    %v40 = vld [vmem:[#allocation2] sm:$0xff]
    %v41 = vld [vmem:[#allocation2 + $0x8] sm:$0xff]
    %v42 = vmax.f32 %v40, 0.0
    %v43 = vmax.f32 %v41, 0.0
    %v44 = vpack.c.bf16 %v43, %v42
    %v45 = vld [vmem:[#allocation4] sm:$0xf]
    %v46 = vld [vmem:[#allocation4 + $0x4] sm:$0xf]
    %v47 = vld [vmem:[#allocation4 + $0x8] sm:$0xf]
    %v48 = vld [vmem:[#allocation4 + $0xc] sm:$0xf]
    %v49 = vld [vmem:[#allocation4 + $0x1c] sm:$0x4]
    %v50 = vunpack.c.l.bf16 %v49
    %v51 = vlaneseq
    %v52 = vshrl.u32 %v51, 7
    %v53 = vsub.s32 4, %v52
    %v54 = vrot.slane %v50, %v53
    %v59 = vunpack.c.l.b16 %v45
    %v60 = vunpack.c.l.b16 %v46
    %v61 = vunpack.c.l.b16 %v47
    %v62 = vunpack.c.l.b16 %v48
    %v63 = vpack.c.b16 %v60, %v59
    %v64 = vpack.c.b16 %v62, %v61
    %vm67 = vcmask 261120
    %v69 = vsel %vm67, %v44, 0
    %71 = vmatprep.subr.bf16.mxu0 0
    %72 = vmatpush1.bf16.msra.mxu0 %v63
    %73 = vmatprep.subr.bf16.mxu0 0
    %74 = vmatpush1.bf16.msra.mxu0 %v64
    %75 = vmatprep.subr.bf16.mxu0 0
    %76 = vmatpush1.bf16.msra.mxu0 0
    %77 = vmatprep.subr.bf16.mxu0 0
    %78 = vmatpush1.bf16.msra.mxu0 0
    %79 = vmatprep.subr.bf16.mxu0 0
    %80 = vmatpush1.bf16.msra.mxu0 0
    %81 = vmatprep.subr.bf16.mxu0 0
    %82 = vmatpush1.bf16.msra.mxu0 0
    %83 = vmatprep.subr.bf16.mxu0 0
    %84 = vmatpush1.bf16.msra.mxu0 0
    %85 = vmatprep.subr.bf16.mxu0 0
    %86 = vmatpush1.bf16.msra.mxu0 0
    %87 = vmatprep.subr.bf16.mxu0 0
    %88 = vmatpush1.bf16.msra.mxu0 0
    %89 = vmatprep.subr.bf16.mxu0 0
    %90 = vmatpush1.bf16.msra.mxu0 0
    %91 = vmatprep.subr.bf16.mxu0 0
    %92 = vmatpush1.bf16.msra.mxu0 0
    %93 = vmatprep.subr.bf16.mxu0 0
    %94 = vmatpush1.bf16.msra.mxu0 0
    %95 = vmatprep.subr.bf16.mxu0 0
    %96 = vmatpush1.bf16.msra.mxu0 0
    %97 = vmatprep.subr.bf16.mxu0 0
    %98 = vmatpush1.bf16.msra.mxu0 0
    %99 = vmatprep.subr.bf16.mxu0 0
    %100 = vmatpush1.bf16.msra.mxu0 0
    %101 = vmatprep.subr.bf16.mxu0 0
    %102 = vmatpush1.bf16.msra.mxu0 0
    %103 = vmatprep.mubr.bf16.mxu0 0
    %104 = vmatmul.mubr.bf16.gmra.mrb[0].mxu0 %v69
    %v105 = vpop.f32.mrb[0].mxu0
    %v106 = vadd.f32 %v54, %v105
    %v107 = vpop.f32.mrb[0].mxu0
    %v108 = vpop.f32.mrb[0].mxu0
    %v109 = vadd.f32 %v54, %v108
    %v110 = vpop.f32.mrb[0].mxu0
    %111 = vdwg.mxu0
    %v112 = vmax.f32 %v106, 0.0
    %v113 = vmax.f32 %v109, 0.0
    %v114 = vpack.c.bf16 %v113, %v112
    %v115 = vld [vmem:[#allocation4 + $0x10] sm:$0xf]
    %v116 = vld [vmem:[#allocation4 + $0x14] sm:$0xf]
    %v117 = vlaneseq
    %v118 = vshrl.u32 %v117, 7
    %v119 = vsub.s32 5, %v118
    %v120 = vrot.slane %v50, %v119
    %v123 = vunpack.c.l.b16 %v115
    %v124 = vunpack.c.l.b16 %v116
    %v125 = vpack.c.b16 %v124, %v123
    %vm127 = vcmask 130048
    %v129 = vsel %vm127, %v114, 0
    %131 = vmatprep.subr.bf16.mxu0 0
    %132 = vmatpush1.bf16.msra.mxu0 %v125
    %133 = vmatprep.subr.bf16.mxu0 0
    %134 = vmatpush1.bf16.msra.mxu0 0
    %135 = vmatprep.subr.bf16.mxu0 0
    %136 = vmatpush1.bf16.msra.mxu0 0
    %137 = vmatprep.subr.bf16.mxu0 0
    %138 = vmatpush1.bf16.msra.mxu0 0
    %139 = vmatprep.subr.bf16.mxu0 0
    %140 = vmatpush1.bf16.msra.mxu0 0
    %141 = vmatprep.subr.bf16.mxu0 0
    %142 = vmatpush1.bf16.msra.mxu0 0
    %143 = vmatprep.subr.bf16.mxu0 0
    %144 = vmatpush1.bf16.msra.mxu0 0
    %145 = vmatprep.subr.bf16.mxu0 0
    %146 = vmatpush1.bf16.msra.mxu0 0
    %147 = vmatprep.subr.bf16.mxu0 0
    %148 = vmatpush1.bf16.msra.mxu0 0
    %149 = vmatprep.subr.bf16.mxu0 0
    %150 = vmatpush1.bf16.msra.mxu0 0
    %151 = vmatprep.subr.bf16.mxu0 0
    %152 = vmatpush1.bf16.msra.mxu0 0
    %153 = vmatprep.subr.bf16.mxu0 0
    %154 = vmatpush1.bf16.msra.mxu0 0
    %155 = vmatprep.subr.bf16.mxu0 0
    %156 = vmatpush1.bf16.msra.mxu0 0
    %157 = vmatprep.subr.bf16.mxu0 0
    %158 = vmatpush1.bf16.msra.mxu0 0
    %159 = vmatprep.subr.bf16.mxu0 0
    %160 = vmatpush1.bf16.msra.mxu0 0
    %161 = vmatprep.subr.bf16.mxu0 0
    %162 = vmatpush1.bf16.msra.mxu0 0
    %163 = vmatprep.mubr.bf16.mxu0 0
    %164 = vmatmul.mubr.bf16.gmra.mrb[0].mxu0 %v129
    %v165 = vpop.f32.mrb[0].mxu0
    %v166 = vadd.f32 %v120, %v165
    %v167 = vpop.f32.mrb[0].mxu0
    %v168 = vpop.f32.mrb[0].mxu0
    %v169 = vadd.f32 %v120, %v168
    %v170 = vpop.f32.mrb[0].mxu0
    %171 = vdwg.mxu0
    %v172 = vmax.f32 %v166, 0.0
    %v173 = vmax.f32 %v169, 0.0
    %v174 = vpack.c.bf16 %v173, %v172
    %v175 = vld [vmem:[#allocation4 + $0x18] sm:$0xf]
    %v176 = vld [vmem:[#allocation4 + $0x1c] sm:$0x8]
    %v177 = vunpack.c.l.bf16 %v176
    %v178 = vlaneseq
    %v179 = vshrl.u32 %v178, 7
    %v180 = vsub.s32 6, %v179
    %v181 = vrot.slane %v177, %v180
    %vm182 = vcmask 64512
    %v184 = vsel %vm182, %v174, 0
    %vm186 = vcmask 1043456
    %v188 = vsel %vm186, %v175, 0
    %190 = vmatprep.subr.bf16.mxu0 0
    %191 = vmatpush1.bf16.msra.mxu0 %v188
    %192 = vmatprep.subr.bf16.mxu0 0
    %193 = vmatpush1.bf16.msra.mxu0 0
    %194 = vmatprep.subr.bf16.mxu0 0
    %195 = vmatpush1.bf16.msra.mxu0 0
    %196 = vmatprep.subr.bf16.mxu0 0
    %197 = vmatpush1.bf16.msra.mxu0 0
    %198 = vmatprep.subr.bf16.mxu0 0
    %199 = vmatpush1.bf16.msra.mxu0 0
    %200 = vmatprep.subr.bf16.mxu0 0
    %201 = vmatpush1.bf16.msra.mxu0 0
    %202 = vmatprep.subr.bf16.mxu0 0
    %203 = vmatpush1.bf16.msra.mxu0 0
    %204 = vmatprep.subr.bf16.mxu0 0
    %205 = vmatpush1.bf16.msra.mxu0 0
    %206 = vmatprep.subr.bf16.mxu0 0
    %207 = vmatpush1.bf16.msra.mxu0 0
    %208 = vmatprep.subr.bf16.mxu0 0
    %209 = vmatpush1.bf16.msra.mxu0 0
    %210 = vmatprep.subr.bf16.mxu0 0
    %211 = vmatpush1.bf16.msra.mxu0 0
    %212 = vmatprep.subr.bf16.mxu0 0
    %213 = vmatpush1.bf16.msra.mxu0 0
    %214 = vmatprep.subr.bf16.mxu0 0
    %215 = vmatpush1.bf16.msra.mxu0 0
    %216 = vmatprep.subr.bf16.mxu0 0
    %217 = vmatpush1.bf16.msra.mxu0 0
    %218 = vmatprep.subr.bf16.mxu0 0
    %219 = vmatpush1.bf16.msra.mxu0 0
    %220 = vmatprep.subr.bf16.mxu0 0
    %221 = vmatpush1.bf16.msra.mxu0 0
    %222 = vmatprep.mubr.bf16.mxu0 0
    %223 = vmatmul.mubr.bf16.gmra.mrb[0].mxu0 %v184
    %v224 = vpop.f32.mrb[0].mxu0
    %v225 = vadd.f32 %v181, %v224
    %v226 = vpop.f32.mrb[0].mxu0
    %v227 = vpop.f32.mrb[0].mxu0
    %v228 = vadd.f32 %v181, %v227
    %v229 = vpop.f32.mrb[0].mxu0
    %230 = vdwg.mxu0
    %v231 = vmax.f32 %v225, 0.0
    %v232 = vmax.f32 %v228, 0.0
    %v233 = vpack.c.bf16 %v232, %v231
    %v234 = vld [vmem:[#allocation4 + $0x1c] sm:$0x3]
    %v235 = vlaneseq
    %v236 = vshrl.u32 %v235, 7
    %v237 = vsub.s32 7, %v236
    %v238 = vrot.slane %v177, %v237
    %vm239 = vcmask 31744
    %v241 = vsel %vm239, %v233, 0
    %vm243 = vcmask 1041408
    %v245 = vsel %vm243, %v234, 0
    %247 = vmatprep.subr.bf16.mxu0 0
    %248 = vmatpush1.bf16.msra.mxu0 %v245
    %249 = vmatprep.subr.bf16.mxu0 0
    %250 = vmatpush1.bf16.msra.mxu0 0
    %251 = vmatprep.subr.bf16.mxu0 0
    %252 = vmatpush1.bf16.msra.mxu0 0
    %253 = vmatprep.subr.bf16.mxu0 0
    %254 = vmatpush1.bf16.msra.mxu0 0
    %255 = vmatprep.subr.bf16.mxu0 0
    %256 = vmatpush1.bf16.msra.mxu0 0
    %257 = vmatprep.subr.bf16.mxu0 0
    %258 = vmatpush1.bf16.msra.mxu0 0
    %259 = vmatprep.subr.bf16.mxu0 0
    %260 = vmatpush1.bf16.msra.mxu0 0
    %261 = vmatprep.subr.bf16.mxu0 0
    %262 = vmatpush1.bf16.msra.mxu0 0
    %263 = vmatprep.subr.bf16.mxu0 0
    %264 = vmatpush1.bf16.msra.mxu0 0
    %265 = vmatprep.subr.bf16.mxu0 0
    %266 = vmatpush1.bf16.msra.mxu0 0
    %267 = vmatprep.subr.bf16.mxu0 0
    %268 = vmatpush1.bf16.msra.mxu0 0
    %269 = vmatprep.subr.bf16.mxu0 0
    %270 = vmatpush1.bf16.msra.mxu0 0
    %271 = vmatprep.subr.bf16.mxu0 0
    %272 = vmatpush1.bf16.msra.mxu0 0
    %273 = vmatprep.subr.bf16.mxu0 0
    %274 = vmatpush1.bf16.msra.mxu0 0
    %275 = vmatprep.subr.bf16.mxu0 0
    %276 = vmatpush1.bf16.msra.mxu0 0
    %277 = vmatprep.subr.bf16.mxu0 0
    %278 = vmatpush1.bf16.msra.mxu0 0
    %279 = vmatprep.mubr.bf16.mxu0 0
    %280 = vmatmul.mubr.bf16.gmra.mrb[0].mxu0 %v241
    %v281 = vpop.f32.mrb[0].mxu0
    %v282 = vadd.f32 %v238, %v281
    %v283 = vpop.f32.mrb[0].mxu0
    %v284 = vpop.f32.mrb[0].mxu0
    %v285 = vadd.f32 %v238, %v284
    %v286 = vpop.f32.mrb[0].mxu0
    %287 = vdwg.mxu0
    %288 = vxpose.xlu0.b32.start [1/16] %v282, 128
    %289 = vxpose.xlu0.b32.cont [2/16] %v285, 128
    %290 = vxpose.xlu0.b32.cont [3/16] 0.0, 128
    %291 = vxpose.xlu0.b32.cont [4/16] 0.0, 128
    %292 = vxpose.xlu0.b32.cont [5/16] 0.0, 128
    %293 = vxpose.xlu0.b32.cont [6/16] 0.0, 128
    %294 = vxpose.xlu0.b32.cont [7/16] 0.0, 128
    %295 = vxpose.xlu0.b32.cont [8/16] 0.0, 128
    %296 = vxpose.xlu0.b32.cont [9/16] 0.0, 128
    %297 = vxpose.xlu0.b32.cont [10/16] 0.0, 128
    %298 = vxpose.xlu0.b32.cont [11/16] 0.0, 128
    %299 = vxpose.xlu0.b32.cont [12/16] 0.0, 128
    %300 = vxpose.xlu0.b32.cont [13/16] 0.0, 128
    %301 = vxpose.xlu0.b32.cont [14/16] 0.0, 128
    %302 = vxpose.xlu0.b32.cont [15/16] 0.0, 128
    %303 = vxpose.xlu0.b32.end [16/16] 0.0, 128
    %v304 = vpop.trf.xlu0
    %v305 = vpop.trf.xlu0
    %v306 = vpop.trf.xlu0
    %v307 = vpop.trf.xlu0
    %v308 = vpop.trf.xlu0
    %v309 = vpop.trf.xlu0
    %v310 = vpop.trf.xlu0
    %v311 = vpop.trf.xlu0
    %v312 = vpop.trf.xlu0
    %v313 = vpop.trf.xlu0
    %v314 = vpop.trf.xlu0
    %v315 = vpop.trf.xlu0
    %v316 = vpop.trf.xlu0
    %v317 = vpop.trf.xlu0
    %v318 = vpop.trf.xlu0
    %v319 = vpop.trf.xlu0
    %321 = vset.pattern.permute.xlu0 0
    %322 = vperm.xlu0 %321, %v282
    %v323 = vpop.permute.xlu0 %322
    %326 = vset.pattern.permute.xlu0 0
    %327 = vperm.xlu0 %326, %v285
    %v328 = vpop.permute.xlu0 %327
    %v330 = vlaneseq
    %v331 = vshrl.u32 %v330, 7
    %v332 = vsub.s32 0, %v331
    %v333 = vrot.slane %v304, %v332
    %v334 = vsub.f32 %v323, %v333
    %v335 = vsub.f32 %v328, %v333
    %v336 = vmul.f32 %v334, %v334
    %v337 = vmul.f32 %v335, %v335
    %338 = vset.pattern.permute.xlu0 1
    %339 = vperm.xlu0 %338, %v282
    %v340 = vpop.permute.xlu0 %339
    %342 = vset.pattern.permute.xlu0 1
    %343 = vperm.xlu0 %342, %v285
    %v344 = vpop.permute.xlu0 %343
    %v346 = vlaneseq
    %v347 = vshrl.u32 %v346, 7
    %v348 = vsub.s32 1, %v347
    %v349 = vrot.slane %v304, %v348
    %v350 = vsub.f32 %v340, %v349
    %v351 = vsub.f32 %v344, %v349
    %v352 = vmul.f32 %v350, %v350
    %v353 = vmul.f32 %v351, %v351
    %v354 = vadd.f32 %v336, %v352
    %v355 = vadd.f32 %v337, %v353
    %356 = vset.pattern.permute.xlu0 2
    %357 = vperm.xlu0 %356, %v282
    %v358 = vpop.permute.xlu0 %357
    %360 = vset.pattern.permute.xlu0 2
    %361 = vperm.xlu0 %360, %v285
    %v362 = vpop.permute.xlu0 %361
    %v364 = vlaneseq
    %v365 = vshrl.u32 %v364, 7
    %v366 = vsub.s32 2, %v365
    %v367 = vrot.slane %v304, %v366
    %v368 = vsub.f32 %v358, %v367
    %v369 = vsub.f32 %v362, %v367
    %v370 = vmul.f32 %v368, %v368
    %v371 = vmul.f32 %v369, %v369
    %v372 = vadd.f32 %v354, %v370
    %v373 = vadd.f32 %v355, %v371
    %vm374 = vcmp.gt.f32.partialorder %v372, 0.0
    %vm375 = vcmp.gt.f32.partialorder %v373, 0.0
    %v376 = vrsqrt.pop %v372
    %v377 = vmul.f32 %v372, %v376
    %vm378 = vcmp.eq.f32.partialorder %v372, inf
    %v379 = vsel %vm378, %v372, %v377
    %vm380 = vcmp.eq.f32.partialorder %v372, 0.0
    %v381 = vand.u32 %v372, 2147483648
    %v382 = vsel %vm380, %v381, %v379
    %v383 = vrsqrt.pop %v373
    %v384 = vmul.f32 %v373, %v383
    %vm385 = vcmp.eq.f32.partialorder %v373, inf
    %v386 = vsel %vm385, %v373, %v384
    %vm387 = vcmp.eq.f32.partialorder %v373, 0.0
    %v388 = vand.u32 %v373, 2147483648
    %v389 = vsel %vm387, %v388, %v386
    %v390 = vsel %vm374, %v382, 0.0
    %v391 = vsel %vm375, %v389, 0.0
    %394 = vrot.lane.b32.xlu0 %v390, 112
    %v395 = vpop.permute.xlu0 %394
    %396 = vrot.lane.b32.xlu0 %v391, 112
    %v397 = vpop.permute.xlu0 %396
    %vm400 = vcmask 916480
    %v401 = vsel %vm400, %v282, %v395
    %v402 = vsel %vm400, %v285, %v397
    %403 = vst [vmem:[%s2] sm:$0xff] %v401
    %404 = vst [vmem:[%s2 + $0x8] sm:$0xff] %v402
    // Predicated region
    $region18: #{forward.1} parent=1 // pred_check
      _
    $region19: #{forward.1} parent=1 // pred_check_branch
      %406 = sbr.rel (0) target = $region21
    $region20: #{forward.1} parent=1 // pred_region
      _
    $region21: #{forward.1} parent=1 // pred_fallthru
      _
    // Predicated region
    $region22: #{forward.1} parent=1 // pred_check
      _
    $region23: #{forward.1} parent=1 // pred_check_branch
      %408 = sbr.rel (0) target = $region25
    $region24: #{forward.1} parent=1 // pred_region
      _
    $region25: #{forward.1} parent=1 // pred_fallthru
      _
    %409 = vsyncpa [#allocation3], 1
    %410 = vsyncpa [#allocation5], 1

</llo_original>
